<compile_context>
chip_gen: v7x
topology: tpu7x:2x2x1
jax: 0.10.0
libtpu: 0.0.40
codegen_flags: <defaults>
</compile_context>

<pallas_src>
import functools

import jax
import jax.numpy as jnp
from jax.experimental import pallas as pl
from jax.experimental.pallas import tpu as pltpu


def _mlp_softmax_kernel(*refs, num_layers):
    """refs = (x, w0, b0, w1, b1, ..., w{L-1}, b{L-1}, out).

    Weights arrive already cast to the matmul dtype (bf16 by default) so the
    MXU gets native bf16 operands; biases and all elementwise math stay f32.
    """
    x_ref = refs[0]
    out_ref = refs[-1]
    param_refs = refs[1:-1]

    h = x_ref[...].astype(jnp.float32)
    for i in range(num_layers):
        w = param_refs[2 * i][...]                    # (in, out), matmul dtype
        b = param_refs[2 * i + 1][...]                # (1, out), f32
        h = jnp.dot(h.astype(w.dtype), w,
                    preferred_element_type=jnp.float32) + b
        if i < num_layers - 1:                        # ReLU on all but last layer
            h = jnp.maximum(h, 0.0)

    # Numerically stable softmax over the last axis (all f32).
    m = jnp.max(h, axis=-1, keepdims=True)
    e = jnp.exp(h - m)
    s = jnp.sum(e, axis=-1, keepdims=True)
    # reciprocal goes to the otherwise-idle EUP slot; approx=False keeps the
    # tight tolerance vs. the reference.
    out_ref[...] = (e * pl.reciprocal(s, approx=False)).astype(out_ref.dtype)


def _round_up(n, m):
    return ((n + m - 1) // m) * m


def task_policy_forward(x, params, *, batch_tile=128, matmul_dtype=jnp.bfloat16):
    """x: (batch, input_size); params: list of (W_t (in,out), b (out,)) per Linear.

    The whole MLP + softmax is fused in one pallas_call; the batch dimension is
    padded to a sublane multiple and tiled over a "parallel" grid axis so the
    fixed per-call overhead amortizes over large batches.
    """
    num_layers = len(params)
    batch, in_size = x.shape
    out_size = params[-1][0].shape[1]

    # Pad batch to a multiple of 8 (f32 sublane) and choose the batch tile.
    b_pad = _round_up(batch, 8)
    tb = min(batch_tile, b_pad)
    b_pad = _round_up(b_pad, tb)
    if b_pad != batch:
        x = jnp.pad(x, ((0, b_pad - batch), (0, 0)))
    grid = (b_pad // tb,)

    flat_inputs = [x]
    in_specs = [pl.BlockSpec((tb, in_size), lambda i: (i, 0))]
    for w_t, b in params:
        flat_inputs.append(w_t.astype(matmul_dtype))               # bf16 weights
        flat_inputs.append(b.reshape(1, -1).astype(jnp.float32))   # f32 bias row
        # Constant index_maps: weights/biases are VMEM-resident across the grid.
        in_specs.append(pl.BlockSpec(w_t.shape, lambda i: (0, 0)))
        in_specs.append(pl.BlockSpec((1, b.shape[0]), lambda i: (0, 0)))

    # NOTE: output last dim (out_size) is tiny (<128 lanes) at this model size,
    # so stores are lane-masked; negligible here, revisit if output_size grows.
    out_specs = pl.BlockSpec((tb, out_size), lambda i: (i, 0))

    kernel = functools.partial(_mlp_softmax_kernel, num_layers=num_layers)

    out = pl.pallas_call(
        kernel,
        grid=grid,
        in_specs=in_specs,
        out_specs=out_specs,
        out_shape=jax.ShapeDtypeStruct((b_pad, out_size), x.dtype),
        compiler_params=pltpu.CompilerParams(
            # Each grid step handles an independent batch tile -> parallel
            # (shards across the two TensorCores on v7x; harmless on v5e/v6e).
            dimension_semantics=("parallel",),
        ),
    )(*flat_inputs)

    return out[:batch]


def init_task_policy_params(key, input_size_1, hidden_size, hidden_layer_1,
                            output_size_1, dtype=jnp.float32):
    """PyTorch-style uniform(+-1/sqrt(fan_in)) init.

    Returns a list of (W_transposed (in,out), bias (out,)) tuples, one per
    nn.Linear, in the same order as TaskPolicyNet.layers_1.
    """
    sizes = [input_size_1] + [hidden_size] * hidden_layer_1 + [output_size_1]
    params = []
    for fan_in, fan_out in zip(sizes[:-1], sizes[1:]):
        key, kw, kb = jax.random.split(key, 3)
        bound = 1.0 / jnp.sqrt(jnp.asarray(fan_in, dtype=jnp.float32))
        w_t = jax.random.uniform(kw, (fan_in, fan_out), dtype=dtype,
                                 minval=-bound, maxval=bound)
        b = jax.random.uniform(kb, (fan_out,), dtype=dtype,
                               minval=-bound, maxval=bound)
        params.append((w_t, b))
    return params


def _reference_forward(x, params, matmul_dtype=jnp.bfloat16):
    """Pure-JAX reference matching the kernel's dtype strategy."""
    h = x.astype(jnp.float32)
    n = len(params)
    for i, (w_t, b) in enumerate(params):
        h = jnp.dot(h.astype(matmul_dtype), w_t.astype(matmul_dtype),
                    preferred_element_type=jnp.float32) + b.astype(jnp.float32)
        if i < n - 1:
            h = jnp.maximum(h, 0.0)
    return jax.nn.softmax(h, axis=-1)


if __name__ == "__main__":
    # Small shapes consistent with the module's constructor.
    input_size_1 = 16
    hidden_size = 32
    hidden_layer_1 = 2   # -> 3 Linear layers total
    output_size_1 = 8
    batch = 4

    key = jax.random.PRNGKey(0)
    key, kx = jax.random.split(key)
    x = jax.random.normal(kx, (batch, input_size_1), dtype=jnp.float32)

    params = init_task_policy_params(
        key, input_size_1, hidden_size, hidden_layer_1, output_size_1)

    # --- tiny batch (grid=(1,)) ---
    out = jax.block_until_ready(task_policy_forward(x, params))
    ref_match = jax.block_until_ready(
        _reference_forward(x, params, matmul_dtype=jnp.bfloat16))
    ref_f32 = jax.block_until_ready(
        _reference_forward(x, params, matmul_dtype=jnp.float32))

    assert out.shape == (batch, output_size_1)
    assert jnp.allclose(jnp.sum(out, axis=-1), 1.0, atol=1e-5)
    assert jnp.allclose(out, ref_match, atol=1e-4, rtol=1e-4)
    assert jnp.allclose(out, ref_f32, atol=5e-2, rtol=5e-2)

    # --- larger batch exercises the batch-tiled grid (pad -> 384, 3 tiles) ---
    key, kx2 = jax.random.split(key)
    x_big = jax.random.normal(kx2, (300, input_size_1), dtype=jnp.float32)
    out_big = jax.block_until_ready(task_policy_forward(x_big, params))
    ref_big = jax.block_until_ready(
        _reference_forward(x_big, params, matmul_dtype=jnp.bfloat16))
    assert out_big.shape == (300, output_size_1)
    assert jnp.allclose(jnp.sum(out_big, axis=-1), 1.0, atol=1e-5)
    assert jnp.allclose(out_big, ref_big, atol=1e-4, rtol=1e-4)

    print("KERNEL_OK")
</pallas_src>

<mosaic_0001>
module attributes {stable_mosaic.version = 11 : i64} {
  func.func @_mlp_softmax_kernel(%arg0: i32, %arg1: memref<8x16xf32, #tpu.memory_space<vmem>>, %arg2: memref<16x32xbf16, #tpu.memory_space<vmem>>, %arg3: memref<1x32xf32, #tpu.memory_space<vmem>>, %arg4: memref<32x32xbf16, #tpu.memory_space<vmem>>, %arg5: memref<1x32xf32, #tpu.memory_space<vmem>>, %arg6: memref<32x8xbf16, #tpu.memory_space<vmem>>, %arg7: memref<1x8xf32, #tpu.memory_space<vmem>>, %arg8: memref<8x8xf32, #tpu.memory_space<vmem>>) attributes {dimension_semantics = [#tpu.dimension_semantics<parallel>], iteration_bounds = array<i64: 1>, scalar_prefetch = 0 : i64, scratch_operands = 0 : i64, tpu.core_type = #tpu.core_type<tc>, window_params = [{transform_indices = @transform_0, window_bounds = array<i64: 8, 16>}, {pipeline_mode = #tpu.pipeline_mode<synchronous>, transform_indices = @transform_1, window_bounds = array<i64: 16, 32>}, {pipeline_mode = #tpu.pipeline_mode<synchronous>, transform_indices = @transform_2, window_bounds = array<i64: 1, 32>}, {pipeline_mode = #tpu.pipeline_mode<synchronous>, transform_indices = @transform_3, window_bounds = array<i64: 32, 32>}, {pipeline_mode = #tpu.pipeline_mode<synchronous>, transform_indices = @transform_4, window_bounds = array<i64: 1, 32>}, {pipeline_mode = #tpu.pipeline_mode<synchronous>, transform_indices = @transform_5, window_bounds = array<i64: 32, 8>}, {pipeline_mode = #tpu.pipeline_mode<synchronous>, transform_indices = @transform_6, window_bounds = array<i64: 1, 8>}, {transform_indices = @transform_7, window_bounds = array<i64: 8, 8>}]} {
    %c0 = arith.constant 0 : index
    %c0_0 = arith.constant 0 : index
    %0 = vector.load %arg1[%c0, %c0_0] : memref<8x16xf32, #tpu.memory_space<vmem>>, vector<8x16xf32>
    %c0_1 = arith.constant 0 : index
    %c0_2 = arith.constant 0 : index
    %1 = vector.load %arg2[%c0_1, %c0_2] : memref<16x32xbf16, #tpu.memory_space<vmem>>, vector<16x32xbf16>
    %c0_3 = arith.constant 0 : index
    %c0_4 = arith.constant 0 : index
    %2 = vector.load %arg3[%c0_3, %c0_4] : memref<1x32xf32, #tpu.memory_space<vmem>>, vector<1x32xf32>
    %3 = arith.truncf %0 : vector<8x16xf32> to vector<8x16xbf16>
    %cst = arith.constant dense<0.000000e+00> : vector<8x32xf32>
    %4 = tpu.matmul %3, %1, %cst {dimension_numbers = #tpu.dot_dimension_numbers<[1], [0], [0], [1], [0, 0, 1, 1], [], []>} : vector<8x16xbf16>, vector<16x32xbf16>, vector<8x32xf32> -> vector<8x32xf32>
    %5 = vector.broadcast %2 : vector<1x32xf32> to vector<8x32xf32>
    %6 = arith.addf %4, %5 : vector<8x32xf32>
    %cst_5 = arith.constant 0.000000e+00 : f32
    %7 = vector.broadcast %cst_5 : f32 to vector<8x32xf32>
    %8 = arith.maximumf %6, %7 : vector<8x32xf32>
    %c0_6 = arith.constant 0 : index
    %c0_7 = arith.constant 0 : index
    %9 = vector.load %arg4[%c0_6, %c0_7] : memref<32x32xbf16, #tpu.memory_space<vmem>>, vector<32x32xbf16>
    %c0_8 = arith.constant 0 : index
    %c0_9 = arith.constant 0 : index
    %10 = vector.load %arg5[%c0_8, %c0_9] : memref<1x32xf32, #tpu.memory_space<vmem>>, vector<1x32xf32>
    %11 = arith.truncf %8 : vector<8x32xf32> to vector<8x32xbf16>
    %cst_10 = arith.constant dense<0.000000e+00> : vector<8x32xf32>
    %12 = tpu.matmul %11, %9, %cst_10 {dimension_numbers = #tpu.dot_dimension_numbers<[1], [0], [0], [1], [0, 0, 1, 1], [], []>} : vector<8x32xbf16>, vector<32x32xbf16>, vector<8x32xf32> -> vector<8x32xf32>
    %13 = vector.broadcast %10 : vector<1x32xf32> to vector<8x32xf32>
    %14 = arith.addf %12, %13 : vector<8x32xf32>
    %cst_11 = arith.constant 0.000000e+00 : f32
    %15 = vector.broadcast %cst_11 : f32 to vector<8x32xf32>
    %16 = arith.maximumf %14, %15 : vector<8x32xf32>
    %c0_12 = arith.constant 0 : index
    %c0_13 = arith.constant 0 : index
    %17 = vector.load %arg6[%c0_12, %c0_13] : memref<32x8xbf16, #tpu.memory_space<vmem>>, vector<32x8xbf16>
    %c0_14 = arith.constant 0 : index
    %c0_15 = arith.constant 0 : index
    %18 = vector.load %arg7[%c0_14, %c0_15] : memref<1x8xf32, #tpu.memory_space<vmem>>, vector<1x8xf32>
    %19 = arith.truncf %16 : vector<8x32xf32> to vector<8x32xbf16>
    %cst_16 = arith.constant dense<0.000000e+00> : vector<8x8xf32>
    %20 = tpu.matmul %19, %17, %cst_16 {dimension_numbers = #tpu.dot_dimension_numbers<[1], [0], [0], [1], [0, 0, 1, 1], [], []>} : vector<8x32xbf16>, vector<32x8xbf16>, vector<8x8xf32> -> vector<8x8xf32>
    %21 = vector.broadcast %18 : vector<1x8xf32> to vector<8x8xf32>
    %22 = arith.addf %20, %21 : vector<8x8xf32>
    %cst_17 = arith.constant dense<0xFF800000> : vector<8xf32>
    %23 = vector.multi_reduction <maximumf>, %22, %cst_17 [1] : vector<8x8xf32> to vector<8xf32>
    %24 = vector.shape_cast %23 : vector<8xf32> to vector<8x1xf32>
    %25 = vector.broadcast %24 : vector<8x1xf32> to vector<8x8xf32>
    %26 = arith.subf %22, %25 : vector<8x8xf32>
    %27 = math.exp %26 : vector<8x8xf32>
    %cst_18 = arith.constant dense<0.000000e+00> : vector<8xf32>
    %28 = vector.multi_reduction <add>, %27, %cst_18 [1] : vector<8x8xf32> to vector<8xf32>
    %29 = vector.shape_cast %28 : vector<8xf32> to vector<8x1xf32>
    %30 = tpu.reciprocal %29 : vector<8x1xf32> -> vector<8x1xf32>
    %31 = vector.broadcast %30 : vector<8x1xf32> to vector<8x8xf32>
    %32 = arith.mulf %27, %31 : vector<8x8xf32>
    %c0_19 = arith.constant 0 : index
    %c0_20 = arith.constant 0 : index
    %33 = vector.load %arg8[%c0_19, %c0_20] : memref<8x8xf32, #tpu.memory_space<vmem>>, vector<8x8xf32>
    tpu.vector_store %arg8[%c0_19, %c0_20], %32 {strides = array<i32>} : memref<8x8xf32, #tpu.memory_space<vmem>>, vector<8x8xf32>,
    return
  }
  func.func @transform_0(%arg0: i32) -> (i32, i32) {
    %c0_i32 = arith.constant 0 : i32
    %c0_i32_0 = arith.constant 0 : i32
    return %arg0, %c0_i32 : i32, i32
  }
  func.func @transform_1(%arg0: i32) -> (i32, i32) {
    %c0_i32 = arith.constant 0 : i32
    %c0_i32_0 = arith.constant 0 : i32
    %c0_i32_1 = arith.constant 0 : i32
    return %c0_i32, %c0_i32_0 : i32, i32
  }
  func.func @transform_2(%arg0: i32) -> (i32, i32) {
    %c0_i32 = arith.constant 0 : i32
    %c0_i32_0 = arith.constant 0 : i32
    %c0_i32_1 = arith.constant 0 : i32
    return %c0_i32, %c0_i32_0 : i32, i32
  }
  func.func @transform_3(%arg0: i32) -> (i32, i32) {
    %c0_i32 = arith.constant 0 : i32
    %c0_i32_0 = arith.constant 0 : i32
    %c0_i32_1 = arith.constant 0 : i32
    return %c0_i32, %c0_i32_0 : i32, i32
  }
  func.func @transform_4(%arg0: i32) -> (i32, i32) {
    %c0_i32 = arith.constant 0 : i32
    %c0_i32_0 = arith.constant 0 : i32
    %c0_i32_1 = arith.constant 0 : i32
    return %c0_i32, %c0_i32_0 : i32, i32
  }
  func.func @transform_5(%arg0: i32) -> (i32, i32) {
    %c0_i32 = arith.constant 0 : i32
    %c0_i32_0 = arith.constant 0 : i32
    %c0_i32_1 = arith.constant 0 : i32
    return %c0_i32, %c0_i32_0 : i32, i32
  }
  func.func @transform_6(%arg0: i32) -> (i32, i32) {
    %c0_i32 = arith.constant 0 : i32
    %c0_i32_0 = arith.constant 0 : i32
    %c0_i32_1 = arith.constant 0 : i32
    return %c0_i32, %c0_i32_0 : i32, i32
  }
  func.func @transform_7(%arg0: i32) -> (i32, i32) {
    %c0_i32 = arith.constant 0 : i32
    %c0_i32_0 = arith.constant 0 : i32
    return %arg0, %c0_i32 : i32, i32
  }
}

</mosaic_0001>

<llo_original>
// kernel: tpu_custom_call.1
$region0: #{tpu_custom_call.1}
  #allocation0 [shape = 'u32[]', space=smem, size = 0x4, offset = 0x4, fixed_abs, tag = 'smem constant byte address 0x4 - core index']
  #allocation1 [shape = 'u32[144,128]{1,0:T(1,128)}', space=vmem, size = 0x12000, scoped, tag = 'internal scratch']
  %s0 = inlined_call_operand.vmem [shape: f32[8,16], index: 0, kind: input, shape index: {}]
  %s1 = inlined_call_operand.hbm [shape: bf16[16,32], index: 1, kind: input, shape index: {}]
  %s2 = inlined_call_operand.vmem [shape: f32[1,32], index: 2, kind: input, shape index: {}]
  %s3 = inlined_call_operand.vmem [shape: bf16[32,32], index: 3, kind: input, shape index: {}]
  %s4 = inlined_call_operand.vmem [shape: f32[1,32], index: 4, kind: input, shape index: {}]
  %s5 = inlined_call_operand.vmem [shape: bf16[32,8], index: 5, kind: input, shape index: {}]
  %s6 = inlined_call_operand.vmem [shape: f32[1,8], index: 6, kind: input, shape index: {}]
  %s7 = inlined_call_operand.hbm [shape: f32[8,8], index: 7, kind: output, shape index: {}]
  %s8 = sld [smem:[#allocation0]]
  $region42: #{tpu_custom_call.1} parent=0
    _
  %s10 = ssub.s32 1, %s8
  %s11 = scalar_select 0, %s10, %s8
  $region1: #{tpu_custom_call.1} parent=0
    #allocation2 [shape = 'u8[4096]{0}', space=vmem, size = 0x1000, scoped, tag = 'input window, operand 1, single buffered']
    #allocation3 [shape = 's32[1]{0}', space=sflag, size = 0x4, scoped, tag = 'scoped memory for tpu_custom_call.1']
    #allocation4 [shape = 's32[1]{0}', space=sflag, size = 0x4, scoped, tag = 'scoped memory for tpu_custom_call.1']
    #allocation5 [shape = 'u8[4096]{0}', space=vmem, size = 0x1000, scoped, tag = 'output window, operand 0, single buffered']
    %12 = vsyncpa [#allocation3], 0
    %13 = vsyncpa [#allocation4], 0
    // Predicated region
    $region2: #{tpu_custom_call.1} parent=1 // pred_check
      _
    $region3: #{tpu_custom_call.1} parent=1 // pred_check_branch
      %15 = sbr.rel (0) target = $region5
    $region4: #{tpu_custom_call.1} parent=1 // pred_region
      _
    $region5: #{tpu_custom_call.1} parent=1 // pred_fallthru
      _
    // Predicated region
    $region6: #{tpu_custom_call.1} parent=1 // pred_check
      _
    $region7: #{tpu_custom_call.1} parent=1 // pred_check_branch
      %17 = sbr.rel (0) target = $region9
    $region8: #{tpu_custom_call.1} parent=1 // pred_region
      %s19 = ssub.s32 128, 128
      %20 = vsyncadd [#allocation3], %s19
      %s21 = sshll.u32 [#allocation2], 4
      %s22 = int_to_ptr.vmem [resolvable:$true] %s21
      %27 = dma.hbm_to_vmem [thread:$0]  %s1, 128, %s22, [#allocation3], 64, 64, 4
    $region9: #{tpu_custom_call.1} parent=1 // pred_fallthru
      _
    // Predicated region
    $region10: #{tpu_custom_call.1} parent=1 // pred_check
      _
    $region11: #{tpu_custom_call.1} parent=1 // pred_check_branch
      %29 = sbr.rel (0) target = $region13
    $region12: #{tpu_custom_call.1} parent=1 // pred_region
      _
    $region13: #{tpu_custom_call.1} parent=1 // pred_fallthru
      _
    // Predicated region
    $region14: #{tpu_custom_call.1} parent=1 // pred_check
      _
    $region15: #{tpu_custom_call.1} parent=1 // pred_check_branch
      %31 = sbr.rel (0) target = $region17
    $region16: #{tpu_custom_call.1} parent=1 // pred_region
      _
    $region17: #{tpu_custom_call.1} parent=1 // pred_fallthru
      _
    // Predicated region
    $region18: #{tpu_custom_call.1} parent=1 // pred_check
      _
    $region19: #{tpu_custom_call.1} parent=1 // pred_check_branch
      %33 = sbr.rel (0) target = $region21
    $region20: #{tpu_custom_call.1} parent=1 // pred_region
      _
    $region21: #{tpu_custom_call.1} parent=1 // pred_fallthru
      _
    // Predicated region
    $region22: #{tpu_custom_call.1} parent=1 // pred_check
      _
    $region23: #{tpu_custom_call.1} parent=1 // pred_check_branch
      %35 = sbr.rel (0) target = $region25
    $region24: #{tpu_custom_call.1} parent=1 // pred_region
      _
    $region25: #{tpu_custom_call.1} parent=1 // pred_fallthru
      _
    // Predicated region
    $region26: #{tpu_custom_call.1} parent=1 // pred_check
      _
    $region27: #{tpu_custom_call.1} parent=1 // pred_check_branch
      %37 = sbr.rel (0) target = $region29
    $region28: #{tpu_custom_call.1} parent=1 // pred_region
      _
    $region29: #{tpu_custom_call.1} parent=1 // pred_fallthru
      _
    // Predicated region
    $region30: #{tpu_custom_call.1} parent=1 // pred_check
      _
    $region31: #{tpu_custom_call.1} parent=1 // pred_check_branch
      %39 = sbr.rel (0) target = $region33
    $region32: #{tpu_custom_call.1} parent=1 // pred_region
      %40 = dma.done [#allocation3], 128
    $region33: #{tpu_custom_call.1} parent=1 // pred_fallthru
      _
    %v42 = vld [vmem:[%s0] sm:$0xff]
    %v43 = vld [vmem:[#allocation2] sm:$0xf]
    %v44 = vld [vmem:[#allocation2 + $0x4] sm:$0xf]
    %v45 = vld [vmem:[%s2] sm:$0x1]
    %v46 = vpack.c.bf16 %v42, %v42
    %v48 = vlaneseq
    %v49 = vshrl.u32 %v48, 7
    %v50 = vsub.s32 0, %v49
    %v51 = vrot.slane %v45, %v50
    %v55 = vunpack.c.l.b16 %v43
    %v56 = vunpack.c.l.b16 %v44
    %v57 = vpack.c.b16 %v56, %v55
    %vm59 = vcmask 130048
    %v61 = vsel %vm59, %v46, 0
    %63 = vmatprep.subr.bf16.mxu0 0
    %64 = vmatpush1.bf16.msra.mxu0 %v57
    %65 = vmatprep.subr.bf16.mxu0 0
    %66 = vmatpush1.bf16.msra.mxu0 0
    %67 = vmatprep.subr.bf16.mxu0 0
    %68 = vmatpush1.bf16.msra.mxu0 0
    %69 = vmatprep.subr.bf16.mxu0 0
    %70 = vmatpush1.bf16.msra.mxu0 0
    %71 = vmatprep.subr.bf16.mxu0 0
    %72 = vmatpush1.bf16.msra.mxu0 0
    %73 = vmatprep.subr.bf16.mxu0 0
    %74 = vmatpush1.bf16.msra.mxu0 0
    %75 = vmatprep.subr.bf16.mxu0 0
    %76 = vmatpush1.bf16.msra.mxu0 0
    %77 = vmatprep.subr.bf16.mxu0 0
    %78 = vmatpush1.bf16.msra.mxu0 0
    %79 = vmatprep.subr.bf16.mxu0 0
    %80 = vmatpush1.bf16.msra.mxu0 0
    %81 = vmatprep.subr.bf16.mxu0 0
    %82 = vmatpush1.bf16.msra.mxu0 0
    %83 = vmatprep.subr.bf16.mxu0 0
    %84 = vmatpush1.bf16.msra.mxu0 0
    %85 = vmatprep.subr.bf16.mxu0 0
    %86 = vmatpush1.bf16.msra.mxu0 0
    %87 = vmatprep.subr.bf16.mxu0 0
    %88 = vmatpush1.bf16.msra.mxu0 0
    %89 = vmatprep.subr.bf16.mxu0 0
    %90 = vmatpush1.bf16.msra.mxu0 0
    %91 = vmatprep.subr.bf16.mxu0 0
    %92 = vmatpush1.bf16.msra.mxu0 0
    %93 = vmatprep.subr.bf16.mxu0 0
    %94 = vmatpush1.bf16.msra.mxu0 0
    %95 = vmatprep.mubr.bf16.mxu0 0
    %96 = vmatmul.mubr.bf16.gmra.mrb[0].mxu0 %v61
    %v97 = vpop.f32.mrb[0].mxu0
    %v98 = vadd.f32 %v51, %v97
    %v99 = vpop.f32.mrb[0].mxu0
    %v100 = vpop.f32.mrb[0].mxu0
    %v101 = vpop.f32.mrb[0].mxu0
    %102 = vdwg.mxu0
    %v103 = vmax.f32 %v98, 0.0
    %v104 = vld [vmem:[%s3] sm:$0xf]
    %v105 = vld [vmem:[%s3 + $0x4] sm:$0xf]
    %v106 = vld [vmem:[%s3 + $0x8] sm:$0xf]
    %v107 = vld [vmem:[%s3 + $0xc] sm:$0xf]
    %v108 = vld [vmem:[%s4] sm:$0x1]
    %v109 = vpack.c.bf16 %v103, %v103
    %v111 = vlaneseq
    %v112 = vshrl.u32 %v111, 7
    %v113 = vsub.s32 0, %v112
    %v114 = vrot.slane %v108, %v113
    %v120 = vunpack.c.l.b16 %v104
    %v121 = vunpack.c.l.b16 %v105
    %v122 = vunpack.c.l.b16 %v106
    %v123 = vunpack.c.l.b16 %v107
    %v124 = vpack.c.b16 %v121, %v120
    %v125 = vpack.c.b16 %v123, %v122
    %vm128 = vcmask 261120
    %v130 = vsel %vm128, %v109, 0
    %132 = vmatprep.subr.bf16.mxu0 0
    %133 = vmatpush1.bf16.msra.mxu0 %v124
    %134 = vmatprep.subr.bf16.mxu0 0
    %135 = vmatpush1.bf16.msra.mxu0 %v125
    %136 = vmatprep.subr.bf16.mxu0 0
    %137 = vmatpush1.bf16.msra.mxu0 0
    %138 = vmatprep.subr.bf16.mxu0 0
    %139 = vmatpush1.bf16.msra.mxu0 0
    %140 = vmatprep.subr.bf16.mxu0 0
    %141 = vmatpush1.bf16.msra.mxu0 0
    %142 = vmatprep.subr.bf16.mxu0 0
    %143 = vmatpush1.bf16.msra.mxu0 0
    %144 = vmatprep.subr.bf16.mxu0 0
    %145 = vmatpush1.bf16.msra.mxu0 0
    %146 = vmatprep.subr.bf16.mxu0 0
    %147 = vmatpush1.bf16.msra.mxu0 0
    %148 = vmatprep.subr.bf16.mxu0 0
    %149 = vmatpush1.bf16.msra.mxu0 0
    %150 = vmatprep.subr.bf16.mxu0 0
    %151 = vmatpush1.bf16.msra.mxu0 0
    %152 = vmatprep.subr.bf16.mxu0 0
    %153 = vmatpush1.bf16.msra.mxu0 0
    %154 = vmatprep.subr.bf16.mxu0 0
    %155 = vmatpush1.bf16.msra.mxu0 0
    %156 = vmatprep.subr.bf16.mxu0 0
    %157 = vmatpush1.bf16.msra.mxu0 0
    %158 = vmatprep.subr.bf16.mxu0 0
    %159 = vmatpush1.bf16.msra.mxu0 0
    %160 = vmatprep.subr.bf16.mxu0 0
    %161 = vmatpush1.bf16.msra.mxu0 0
    %162 = vmatprep.subr.bf16.mxu0 0
    %163 = vmatpush1.bf16.msra.mxu0 0
    %164 = vmatprep.mubr.bf16.mxu0 0
    %165 = vmatmul.mubr.bf16.gmra.mrb[0].mxu0 %v130
    %v166 = vpop.f32.mrb[0].mxu0
    %v167 = vadd.f32 %v114, %v166
    %v168 = vpop.f32.mrb[0].mxu0
    %v169 = vpop.f32.mrb[0].mxu0
    %v170 = vpop.f32.mrb[0].mxu0
    %171 = vdwg.mxu0
    %v172 = vmax.f32 %v167, 0.0
    %v173 = vld [vmem:[%s5] sm:$0xf]
    %v174 = vld [vmem:[%s5 + $0x4] sm:$0xf]
    %v175 = vld [vmem:[%s5 + $0x8] sm:$0xf]
    %v176 = vld [vmem:[%s5 + $0xc] sm:$0xf]
    %v177 = vld [vmem:[%s6] sm:$0x1]
    %v178 = vpack.c.bf16 %v172, %v172
    %v180 = vlaneseq
    %v181 = vshrl.u32 %v180, 7
    %v182 = vsub.s32 0, %v181
    %v183 = vrot.slane %v177, %v182
    %v189 = vunpack.c.l.b16 %v173
    %v190 = vunpack.c.l.b16 %v174
    %v191 = vunpack.c.l.b16 %v175
    %v192 = vunpack.c.l.b16 %v176
    %v193 = vpack.c.b16 %v190, %v189
    %v194 = vpack.c.b16 %v192, %v191
    %v198 = vsel %vm128, %v178, 0
    %200 = vmatprep.subr.bf16.mxu0 0
    %201 = vmatpush1.bf16.msra.mxu0 %v193
    %202 = vmatprep.subr.bf16.mxu0 0
    %203 = vmatpush1.bf16.msra.mxu0 %v194
    %204 = vmatprep.subr.bf16.mxu0 0
    %205 = vmatpush1.bf16.msra.mxu0 0
    %206 = vmatprep.subr.bf16.mxu0 0
    %207 = vmatpush1.bf16.msra.mxu0 0
    %208 = vmatprep.subr.bf16.mxu0 0
    %209 = vmatpush1.bf16.msra.mxu0 0
    %210 = vmatprep.subr.bf16.mxu0 0
    %211 = vmatpush1.bf16.msra.mxu0 0
    %212 = vmatprep.subr.bf16.mxu0 0
    %213 = vmatpush1.bf16.msra.mxu0 0
    %214 = vmatprep.subr.bf16.mxu0 0
    %215 = vmatpush1.bf16.msra.mxu0 0
    %216 = vmatprep.subr.bf16.mxu0 0
    %217 = vmatpush1.bf16.msra.mxu0 0
    %218 = vmatprep.subr.bf16.mxu0 0
    %219 = vmatpush1.bf16.msra.mxu0 0
    %220 = vmatprep.subr.bf16.mxu0 0
    %221 = vmatpush1.bf16.msra.mxu0 0
    %222 = vmatprep.subr.bf16.mxu0 0
    %223 = vmatpush1.bf16.msra.mxu0 0
    %224 = vmatprep.subr.bf16.mxu0 0
    %225 = vmatpush1.bf16.msra.mxu0 0
    %226 = vmatprep.subr.bf16.mxu0 0
    %227 = vmatpush1.bf16.msra.mxu0 0
    %228 = vmatprep.subr.bf16.mxu0 0
    %229 = vmatpush1.bf16.msra.mxu0 0
    %230 = vmatprep.subr.bf16.mxu0 0
    %231 = vmatpush1.bf16.msra.mxu0 0
    %232 = vmatprep.mubr.bf16.mxu0 0
    %233 = vmatmul.mubr.bf16.gmra.mrb[0].mxu0 %v198
    %v234 = vpop.f32.mrb[0].mxu0
    %v235 = vadd.f32 %v183, %v234
    %v236 = vpop.f32.mrb[0].mxu0
    %v237 = vpop.f32.mrb[0].mxu0
    %v238 = vpop.f32.mrb[0].mxu0
    %239 = vdwg.mxu0
    %vm240 = vcmask 64512
    %v241 = vsel %vm240, %v235, -inf
    %242 = vmax.xlane.f32.xlu0 %v241
    %v243 = vpop.xlane.xlu0 %242
    %v244 = vsub.f32 %v235, %v243
    %v245 = vmul.f32 %v244, 1.442695
    %v246 = vpow.pop %v245
    %v247 = vsel %vm240, %v246, 0.0
    %248 = vadd.xlane.f32.xlu0 %v247
    %v249 = vpop.xlane.xlu0 %248
    %v250 = vrcp.pop %v249
    %v251 = vmul.f32 %v246, %v250
    %252 = vst.msk [vmem:[#allocation5] sm:$0xff] %vm240, %v251
    // Predicated region
    $region34: #{tpu_custom_call.1} parent=1 // pred_check
      _
    $region35: #{tpu_custom_call.1} parent=1 // pred_check_branch
      %254 = sbr.rel (0) target = $region37
    $region36: #{tpu_custom_call.1} parent=1 // pred_region
      %s256 = ssub.s32 128, 128
      %257 = vsyncadd [#allocation4], %s256
      %s259 = sshll.u32 [#allocation5], 4
      %s260 = int_to_ptr.vmem [resolvable:$true] %s259
      %262 = dma.vmem_to_hbm [thread:$0]  %s260, 128, %s7, [#allocation4]
    $region37: #{tpu_custom_call.1} parent=1 // pred_fallthru
      _
    // Predicated region
    $region38: #{tpu_custom_call.1} parent=1 // pred_check
      _
    $region39: #{tpu_custom_call.1} parent=1 // pred_check_branch
      %264 = sbr.rel (0) target = $region41
    $region40: #{tpu_custom_call.1} parent=1 // pred_region
      %265 = dma.done [#allocation4], 128
    $region41: #{tpu_custom_call.1} parent=1 // pred_fallthru
      _
    %266 = vsyncpa [#allocation3], 1
    %267 = vsyncpa [#allocation4], 1

</llo_original>
